<compile_context>
chip_gen: v6e
topology: v6e:2x2x1
jax: 0.10.0
libtpu: 0.0.40
codegen_flags: <defaults>
</compile_context>

<pallas_src>
import jax
import jax.numpy as jnp
from jax import lax
from jax.experimental import pallas as pl
from jax.experimental.pallas import tpu as pltpu

LANES = 128
SUBLANES = 8


def _round_up(x: int, m: int) -> int:
    return ((x + m - 1) // m) * m


def _sublane_multiple(dtype) -> int:
    """Minimum sublane multiple for a dtype: f32->8, bf16->16, int8/fp8->32."""
    bits = jnp.dtype(dtype).itemsize * 8
    return max(SUBLANES, (SUBLANES * 32) // bits)


def _make_kernel(total: int, block_rows: int, chunk: int, needs_mask: bool):
    """Build a kernel closed over static shape/mask parameters."""
    n_full = block_rows // chunk
    rem = block_rows - n_full * chunk  # multiple of SUBLANES by construction

    def kernel(pred_ref, lab_ref, out_ref):
        row0 = pl.program_id(0) * block_rows  # first global row of this block

        def chunk_sum(r0, crows, acc):
            # Load a (crows, 128) lane-dense slab and upcast in-register.
            x = pred_ref[pl.ds(r0, crows), :].astype(jnp.float32)
            y = lab_ref[pl.ds(r0, crows), :].astype(jnp.float32)
            # Numerically stable BCE-with-logits (matches torch.nn.BCEWithLogitsLoss):
            #   max(x, 0) - x*y + log(1 + exp(-|x|))
            bce = jnp.maximum(x, 0.0) - x * y + jnp.log1p(jnp.exp(-jnp.abs(x)))
            if needs_mask:
                # Mask out-of-range elements (last-block OOB rows / <128 tail) by global index.
                ids = ((row0 + r0) * LANES
                       + lax.broadcasted_iota(jnp.int32, (crows, LANES), 0) * LANES
                       + lax.broadcasted_iota(jnp.int32, (crows, LANES), 1))
                bce = jnp.where(ids < total, bce, 0.0)
            # Whole-vreg adds only (pure VPU); the cross-lane reduce happens once in JAX.
            return acc + bce.reshape(crows // SUBLANES, SUBLANES, LANES).sum(axis=0)

        acc = jnp.zeros((SUBLANES, LANES), jnp.float32)
        acc = lax.fori_loop(
            0, n_full,
            lambda c, a: chunk_sum(pl.multiple_of(c * chunk, chunk), chunk, a),
            acc,
            unroll=(n_full <= 8))
        if rem:
            acc = chunk_sum(n_full * chunk, rem, acc)
        out_ref[...] = acc.reshape(1, SUBLANES, LANES)

    return kernel


def instance_loss(pred_logits: jax.Array, adj_labels: jax.Array, *,
                  block_rows: int = 2048) -> jax.Array:
    """pred_logits, adj_labels: [G, N, N] (any float/int dtype). Returns scalar float32 loss."""
    assert pred_logits.shape == adj_labels.shape, "pred/label shape mismatch"
    G, N, _ = pred_logits.shape
    total = G * N * N

    # Sublane multiple required by the narrower of the two input dtypes (8/16/32 -> use max).
    mult = max(_sublane_multiple(pred_logits.dtype), _sublane_multiple(adj_labels.dtype))
    if block_rows < mult or block_rows % mult != 0:
        raise ValueError(f"block_rows={block_rows} must be a positive multiple of {mult} "
                         f"for dtypes {pred_logits.dtype}/{adj_labels.dtype}")

    # Free (no-copy) flatten + lane-dense reshape. Only if total is not a multiple of 128 do
    # we pad a tiny (<128 elem) tail; padded elements are masked in-kernel so values don't matter.
    rows = _round_up(total, LANES) // LANES
    pad = rows * LANES - total
    pred_flat = pred_logits.reshape(-1)
    lab_flat = adj_labels.reshape(-1)
    if pad:
        # TODO(synk): this tail pad still costs one HBM pass per input via concatenate; the
        # fully zero-copy path requires G*N*N % 128 == 0 (true for typical graph sizes).
        pred_flat = jnp.concatenate([pred_flat, jnp.zeros((pad,), pred_flat.dtype)])
        lab_flat = jnp.concatenate([lab_flat, jnp.zeros((pad,), lab_flat.dtype)])
    pred2d = pred_flat.reshape(rows, LANES)
    lab2d = lab_flat.reshape(rows, LANES)

    # Balance the grid: cap by the requested block size, force >= 2 blocks when there is
    # enough work (so v7x can shard the "parallel" axis across both TensorCores), and size
    # blocks evenly so the last block carries minimal out-of-bounds padding.
    num_blocks = max(1, pl.cdiv(rows, block_rows))
    if num_blocks == 1 and rows >= 2 * mult:
        num_blocks = 2
    block_rows = _round_up(pl.cdiv(rows, num_blocks), mult)
    num_blocks = pl.cdiv(rows, block_rows)

    # Sub-chunk size for the in-kernel accumulator loop (bounds live f32 temporaries).
    chunk = block_rows if block_rows <= 256 else 256

    needs_mask = (pad != 0) or (rows % block_rows != 0)
    kernel = _make_kernel(total=total, block_rows=block_rows, chunk=chunk,
                          needs_mask=needs_mask)

    itemsize_in = (jnp.dtype(pred_logits.dtype).itemsize
                   + jnp.dtype(adj_labels.dtype).itemsize)
    cost = pl.CostEstimate(
        flops=6 * total,
        transcendentals=2 * total,
        bytes_accessed=total * itemsize_in + num_blocks * SUBLANES * LANES * 4,
    )

    partials = pl.pallas_call(
        kernel,
        out_shape=jax.ShapeDtypeStruct((num_blocks, SUBLANES, LANES), jnp.float32),
        grid_spec=pltpu.PrefetchScalarGridSpec(
            num_scalar_prefetch=0,
            grid=(num_blocks,),
            in_specs=[
                pl.BlockSpec((block_rows, LANES), lambda i: (i, 0)),
                pl.BlockSpec((block_rows, LANES), lambda i: (i, 0)),
            ],
            out_specs=pl.BlockSpec((1, SUBLANES, LANES), lambda i: (i, 0, 0)),
        ),
        compiler_params=pltpu.CompilerParams(
            dimension_semantics=("parallel",),  # independent per-block partials -> megacore-friendly
        ),
        cost_estimate=cost,
    )(pred2d, lab2d)

    # mean over graphs of per-graph means == total BCE sum / (G*N*N) (uniform graph size).
    return jnp.sum(partials) / jnp.float32(total)


def _reference(pred_logits, adj_labels):
    x = pred_logits.astype(jnp.float32)
    y = adj_labels.astype(jnp.float32)
    elem = jnp.maximum(x, 0.0) - x * y + jnp.log1p(jnp.exp(-jnp.abs(x)))
    per_graph = jnp.mean(elem, axis=(1, 2))
    return jnp.mean(per_graph)


if __name__ == "__main__":
    key = jax.random.PRNGKey(0)
    G, N = 2, 16  # 2 graphs per batch, 16 nodes each

    k_pred, k_adj = jax.random.split(key)
    pred = jax.random.normal(k_pred, (G, N, N), dtype=jnp.float32)
    # synthetic dense adjacency labels (what label.adj().to_dense().float() would yield)
    adj = (jax.random.uniform(k_adj, (G, N, N)) < 0.3).astype(jnp.float32)

    loss = instance_loss(pred, adj)
    loss = jax.block_until_ready(loss)

    ref = _reference(pred, adj)
    assert jnp.allclose(loss, ref, atol=1e-5, rtol=1e-5), (loss, ref)

    print("KERNEL_OK")
</pallas_src>

<mosaic_0001>
module attributes {stable_mosaic.version = 11 : i64} {
  func.func @kernel(%arg0: i32, %arg1: memref<8x128xf32, #tpu.memory_space<vmem>>, %arg2: memref<8x128xf32, #tpu.memory_space<vmem>>, %arg3: memref<1x8x128xf32, #tpu.memory_space<vmem>>) attributes {dimension_semantics = [#tpu.dimension_semantics<parallel>], iteration_bounds = array<i64: 1>, scalar_prefetch = 0 : i64, scratch_operands = 0 : i64, tpu.core_type = #tpu.core_type<tc>, window_params = [{transform_indices = @transform_0, window_bounds = array<i64: 8, 128>}, {transform_indices = @transform_1, window_bounds = array<i64: 8, 128>}, {transform_indices = @transform_2, window_bounds = array<i64: 1, 8, 128>}]} {
    %c8_i32 = arith.constant 8 : i32
    %0 = arith.muli %arg0, %c8_i32 : i32
    %cst = arith.constant 0.000000e+00 : f32
    %1 = vector.broadcast %cst : f32 to vector<8x128xf32>
    %c0_i32 = arith.constant 0 : i32
    %c8_i32_0 = arith.constant 8 : i32
    %2 = arith.muli %c0_i32, %c8_i32_0 : i32
    %3 = tpu.assume_multiple %2, 8 : i32
    %4 = arith.index_cast %3 : i32 to index
    %c0 = arith.constant 0 : index
    %5 = vector.load %arg1[%4, %c0] : memref<8x128xf32, #tpu.memory_space<vmem>>, vector<8x128xf32>
    %6 = arith.index_cast %3 : i32 to index
    %c0_1 = arith.constant 0 : index
    %7 = vector.load %arg2[%6, %c0_1] : memref<8x128xf32, #tpu.memory_space<vmem>>, vector<8x128xf32>
    %cst_2 = arith.constant 0.000000e+00 : f32
    %8 = vector.broadcast %cst_2 : f32 to vector<8x128xf32>
    %9 = arith.maximumf %5, %8 : vector<8x128xf32>
    %10 = arith.mulf %5, %7 : vector<8x128xf32>
    %11 = arith.subf %9, %10 : vector<8x128xf32>
    %12 = math.absf %5 : vector<8x128xf32>
    %cst_3 = arith.constant 0.000000e+00 : f32
    %13 = vector.broadcast %cst_3 : f32 to vector<8x128xf32>
    %14 = arith.subf %13, %12 : vector<8x128xf32>
    %15 = math.exp %14 : vector<8x128xf32>
    %16 = math.log1p %15 : vector<8x128xf32>
    %17 = arith.addf %11, %16 : vector<8x128xf32>
    %18 = arith.addi %0, %3 : i32
    %c128_i32 = arith.constant 128 : i32
    %19 = arith.muli %18, %c128_i32 : i32
    %20 = tpu.iota {dimensions = array<i32: 0>} : vector<8x128xi32>
    %c128_i32_4 = arith.constant 128 : i32
    %21 = vector.broadcast %c128_i32_4 : i32 to vector<8x128xi32>
    %22 = arith.muli %20, %21 : vector<8x128xi32>
    %23 = vector.broadcast %19 : i32 to vector<8x128xi32>
    %24 = arith.addi %23, %22 : vector<8x128xi32>
    %25 = tpu.iota {dimensions = array<i32: 1>} : vector<8x128xi32>
    %26 = arith.addi %24, %25 : vector<8x128xi32>
    %c512_i32 = arith.constant 512 : i32
    %27 = vector.broadcast %c512_i32 : i32 to vector<8x128xi32>
    %28 = arith.cmpi slt, %26, %27 : vector<8x128xi32>
    %cst_5 = arith.constant 0.000000e+00 : f32
    %29 = vector.broadcast %cst_5 : f32 to vector<8x128xf32>
    %30 = arith.select %28, %17, %29 : vector<8x128xi1>, vector<8x128xf32>
    %31 = vector.shape_cast %30 : vector<8x128xf32> to vector<1x8x128xf32>
    %cst_6 = arith.constant dense<0.000000e+00> : vector<8x128xf32>
    %32 = vector.multi_reduction <add>, %31, %cst_6 [0] : vector<1x8x128xf32> to vector<8x128xf32>
    %33 = arith.addf %1, %32 : vector<8x128xf32>
    %c1_i32 = arith.constant 1 : i32
    %34 = vector.shape_cast %33 : vector<8x128xf32> to vector<1x8x128xf32>
    %c0_7 = arith.constant 0 : index
    %c0_8 = arith.constant 0 : index
    %c0_9 = arith.constant 0 : index
    %35 = vector.load %arg3[%c0_7, %c0_8, %c0_9] : memref<1x8x128xf32, #tpu.memory_space<vmem>>, vector<1x8x128xf32>
    tpu.vector_store %arg3[%c0_7, %c0_8, %c0_9], %34 {strides = array<i32>} : memref<1x8x128xf32, #tpu.memory_space<vmem>>, vector<1x8x128xf32>,
    return
  }
  func.func @transform_0(%arg0: i32) -> (i32, i32) {
    %c0_i32 = arith.constant 0 : i32
    %c0_i32_0 = arith.constant 0 : i32
    return %arg0, %c0_i32 : i32, i32
  }
  func.func @transform_1(%arg0: i32) -> (i32, i32) {
    %c0_i32 = arith.constant 0 : i32
    %c0_i32_0 = arith.constant 0 : i32
    return %arg0, %c0_i32 : i32, i32
  }
  func.func @transform_2(%arg0: i32) -> (i32, i32, i32) {
    %c0_i32 = arith.constant 0 : i32
    %c0_i32_0 = arith.constant 0 : i32
    %c0_i32_1 = arith.constant 0 : i32
    return %arg0, %c0_i32, %c0_i32_0 : i32, i32, i32
  }
}

</mosaic_0001>

<llo_original>
// kernel: tpu_custom_call.1
$region0: #{tpu_custom_call.1}
  #allocation0 [shape = 'u32[]', space=smem, size = 0x4, offset = 0x4, fixed_abs, tag = 'smem constant byte address 0x4 - core index']
  #allocation1 [shape = 'u32[144,128]{1,0:T(1,128)}', space=vmem, size = 0x12000, scoped, tag = 'internal scratch']
  %s0 = inlined_call_operand.hbm [shape: f32[4,128], index: 0, kind: input, shape index: {}]
  %s1 = inlined_call_operand.hbm [shape: f32[4,128], index: 1, kind: input, shape index: {}]
  %s2 = inlined_call_operand.hbm [shape: f32[1,8,128], index: 2, kind: output, shape index: {}]
  %s3 = sld [smem:[#allocation0]]
  $region26: #{tpu_custom_call.1} parent=0
    _
  %s5 = ssub.s32 1, %s3
  %s6 = scalar_select 0, %s5, %s3
  $region1: #{tpu_custom_call.1} parent=0
    #allocation2 [shape = 'u8[4096]{0}', space=vmem, size = 0x1000, scoped, tag = 'input window, operand 0, single buffered']
    #allocation3 [shape = 's32[1]{0}', space=sflag, size = 0x4, scoped, tag = 'scoped memory for tpu_custom_call.1']
    #allocation4 [shape = 's32[1]{0}', space=sflag, size = 0x4, scoped, tag = 'scoped memory for tpu_custom_call.1']
    #allocation5 [shape = 'u8[4096]{0}', space=vmem, size = 0x1000, scoped, tag = 'input window, operand 1, single buffered']
    #allocation6 [shape = 's32[1]{0}', space=sflag, size = 0x4, scoped, tag = 'scoped memory for tpu_custom_call.1']
    #allocation7 [shape = 'u8[4096]{0}', space=vmem, size = 0x1000, scoped, tag = 'output window, operand 0, single buffered']
    %7 = vsyncpa [#allocation3], 0
    %8 = vsyncpa [#allocation6], 0
    %9 = vsyncpa [#allocation4], 0
    // Predicated region
    $region2: #{tpu_custom_call.1} parent=1 // pred_check
      _
    $region3: #{tpu_custom_call.1} parent=1 // pred_check_branch
      %11 = sbr.rel (0) target = $region5
    $region4: #{tpu_custom_call.1} parent=1 // pred_region
      %s13 = ssub.s32 128, 64
      %14 = vsyncadd [#allocation3], %s13
      %s15 = sshll.u32 [#allocation2], 4
      %s16 = int_to_ptr.vmem [resolvable:$true] %s15
      %21 = dma.hbm_to_vmem [thread:$0]  %s0, 64, %s16, [#allocation3], 64, 64, 4
    $region5: #{tpu_custom_call.1} parent=1 // pred_fallthru
      _
    // Predicated region
    $region6: #{tpu_custom_call.1} parent=1 // pred_check
      _
    $region7: #{tpu_custom_call.1} parent=1 // pred_check_branch
      %23 = sbr.rel (0) target = $region9
    $region8: #{tpu_custom_call.1} parent=1 // pred_region
      %s25 = ssub.s32 128, 64
      %26 = vsyncadd [#allocation6], %s25
      %s27 = sshll.u32 [#allocation5], 4
      %s28 = int_to_ptr.vmem [resolvable:$true] %s27
      %33 = dma.hbm_to_vmem [thread:$0]  %s1, 64, %s28, [#allocation6], 64, 64, 4
    $region9: #{tpu_custom_call.1} parent=1 // pred_fallthru
      _
    // Predicated region
    $region10: #{tpu_custom_call.1} parent=1 // pred_check
      _
    $region11: #{tpu_custom_call.1} parent=1 // pred_check_branch
      %35 = sbr.rel (0) target = $region13
    $region12: #{tpu_custom_call.1} parent=1 // pred_region
      %36 = dma.done [#allocation3], 128
    $region13: #{tpu_custom_call.1} parent=1 // pred_fallthru
      _
    // Predicated region
    $region14: #{tpu_custom_call.1} parent=1 // pred_check
      _
    $region15: #{tpu_custom_call.1} parent=1 // pred_check_branch
      %38 = sbr.rel (0) target = $region17
    $region16: #{tpu_custom_call.1} parent=1 // pred_region
      %39 = dma.done [#allocation6], 128
    $region17: #{tpu_custom_call.1} parent=1 // pred_fallthru
      _
    %s40 = smul.u32 0, 8
    %v41 = vld [vmem:[#allocation2] sm:$0xff]
    %v42 = vld [vmem:[#allocation5] sm:$0xff]
    %v43 = vmax.f32 %v41, 0.0
    %v44 = vmul.f32 %v41, %v42
    %v45 = vsub.f32 %v43, %v44
    %v46 = vand.u32 2147483647, %v41
    %v47 = vsub.f32 0.0, %v46
    %v48 = vmul.f32 %v47, 1.442695
    %v49 = vpow.pop %v48
    %v50 = vadd.f32 %v49, 1.0
    %v51 = vlog2.pop %v50
    %v52 = vmul.f32 %v51, 0.6931472
    %v53 = vmul.f32 -0.5, %v49
    %v54 = vadd.f32 %v53, 1.0
    %v55 = vmul.f32 %v54, %v49
    %v56 = vand.u32 2147483647, %v49
    %vm57 = vcmp.lt.f32.partialorder %v56, 0.0004427343
    %v58 = vsel %vm57, %v55, %v52
    %v59 = vadd.f32 %v45, %v58
    %s60 = sadd.s32 %s40, 0
    %s61 = smul.u32 %s60, 128
    %v62 = vlaneseq
    %v63 = vshrl.u32 %v62, 7
    %v64 = vmul.u32 %v63, 128
    %v65 = vstv %s61
    %v66 = vadd.s32 %v65, %v64
    %v67 = vlaneseq
    %v68 = vand.u32 %v67, 127
    %v69 = vadd.s32 %v66, %v68
    %vm70 = vcmp.lt.s32.totalorder %v69, 512
    %v71 = vsel %vm70, %v59, 0.0
    %v72 = vadd.f32 %v71, 0.0
    %v73 = vadd.f32 %v72, 0.0
    %74 = vst [vmem:[#allocation7] sm:$0xff] %v73
    // Predicated region
    $region18: #{tpu_custom_call.1} parent=1 // pred_check
      _
    $region19: #{tpu_custom_call.1} parent=1 // pred_check_branch
      %76 = sbr.rel (0) target = $region21
    $region20: #{tpu_custom_call.1} parent=1 // pred_region
      %s78 = ssub.s32 128, 128
      %79 = vsyncadd [#allocation4], %s78
      %s81 = sshll.u32 [#allocation7], 4
      %s82 = int_to_ptr.vmem [resolvable:$true] %s81
      %84 = dma.vmem_to_hbm [thread:$0]  %s82, 128, %s2, [#allocation4]
    $region21: #{tpu_custom_call.1} parent=1 // pred_fallthru
      _
    // Predicated region
    $region22: #{tpu_custom_call.1} parent=1 // pred_check
      _
    $region23: #{tpu_custom_call.1} parent=1 // pred_check_branch
      %86 = sbr.rel (0) target = $region25
    $region24: #{tpu_custom_call.1} parent=1 // pred_region
      %87 = dma.done [#allocation4], 128
    $region25: #{tpu_custom_call.1} parent=1 // pred_fallthru
      _
    %88 = vsyncpa [#allocation3], 1
    %89 = vsyncpa [#allocation6], 1
    %90 = vsyncpa [#allocation4], 1

</llo_original>
